<compile_context>
chip_gen: v5e
topology: v5e:2x2
jax: 0.10.0
libtpu: 0.0.40
codegen_flags: <defaults>
</compile_context>

<pallas_src>
import jax
import jax.numpy as jnp
from jax.experimental import pallas as pl
from jax.experimental.pallas import tpu as pltpu

LANE = 128   # lane width / MXU column granularity
SUB = 16     # bf16 sublane packing


def _round_up(x, m):
    return (x + m - 1) // m * m


def mlp_kernel(x_ref, w1_ref, b1_ref, w2_ref, b2_ref, w3_ref, b3_ref, o_ref):
    # x arrives f32; cast to bf16 in-kernel (VPU), accumulate in f32 on the MXU.
    x = x_ref[...].astype(jnp.bfloat16)
    # Layer 1: bf16 MXU matmul, f32 accumulation, f32 bias + ReLU (VPU).
    h1 = jnp.dot(x, w1_ref[...], preferred_element_type=jnp.float32)
    h1 = jnp.maximum(h1 + b1_ref[...], 0.0)
    # Layer 2
    h2 = jnp.dot(h1.astype(jnp.bfloat16), w2_ref[...],
                 preferred_element_type=jnp.float32)
    h2 = jnp.maximum(h2 + b2_ref[...], 0.0)
    # Layer 3 (output columns padded to 128 -> lane-dense, unmasked bf16 store).
    y = jnp.dot(h2.astype(jnp.bfloat16), w3_ref[...],
                preferred_element_type=jnp.float32)
    o_ref[...] = (y + b3_ref[...]).astype(o_ref.dtype)


def prepare_params(w1, b1, w2, b2, w3, b3):
    """One-time param prep: pad output/contraction dims to 128 and cast to bf16.

    w*: (in_features, out_features) f32 (transposed vs. torch's (out, in)).
    b*: (out_features,) or (1, out_features) f32.
    Also keeps f32 originals for the small-batch plain-XLA fallback path.
    """
    f32, bf16 = jnp.float32, jnp.bfloat16

    def pad2(a, rows, cols, dtype):
        a = jnp.asarray(a, f32)
        return jnp.pad(a, ((0, rows - a.shape[0]),
                           (0, cols - a.shape[1]))).astype(dtype)

    D_in, H1 = w1.shape
    H2 = w2.shape[1]
    D_out = w3.shape[1]
    H1_p, H2_p, D_out_p = (_round_up(d, LANE) for d in (H1, H2, D_out))

    b1 = jnp.asarray(b1, f32).reshape(1, -1)
    b2 = jnp.asarray(b2, f32).reshape(1, -1)
    b3 = jnp.asarray(b3, f32).reshape(1, -1)

    return dict(
        dims=(D_in, H1, H2, D_out),
        # Pallas-kernel params (padded, bf16 weights / f32 biases).
        # W1's contraction dim (D_in) stays unpadded to match unpadded x.
        w1=pad2(w1, D_in, H1_p, bf16),
        w2=pad2(w2, H1_p, H2_p, bf16),
        w3=pad2(w3, H2_p, D_out_p, bf16),
        b1=pad2(b1, 1, H1_p, f32),
        b2=pad2(b2, 1, H2_p, f32),
        b3=pad2(b3, 1, D_out_p, f32),
        # Originals for the tiny-batch fallback (full torch f32 semantics).
        w1_f32=jnp.asarray(w1, f32), b1_f32=b1,
        w2_f32=jnp.asarray(w2, f32), b2_f32=b2,
        w3_f32=jnp.asarray(w3, f32), b3_f32=b3,
    )


def three_layer_net(x, params, *, tb=512, use_pallas=None, min_pallas_batch=128):
    """Fused Linear->ReLU->Linear->ReLU->Linear.  Returns (B, D_out) f32.

    x: (B, D_in) f32.  params: output of prepare_params().
    use_pallas=None -> auto (Pallas only when B >= min_pallas_batch);
    True/False forces the path.
    """
    f32, bf16 = jnp.float32, jnp.bfloat16
    D_in, H1, H2, D_out = params["dims"]
    B = x.shape[0]
    assert x.shape[1] == D_in
    x = x.astype(f32)

    if use_pallas is None:
        use_pallas = B >= min_pallas_batch
    if not use_pallas:
        # Tiny batches: a Pallas call is pure fixed overhead; let XLA fuse it.
        h1 = jnp.maximum(x @ params["w1_f32"] + params["b1_f32"], 0.0)
        h2 = jnp.maximum(h1 @ params["w2_f32"] + params["b2_f32"], 0.0)
        return h2 @ params["w3_f32"] + params["b3_f32"]

    w1_p, w2_p, w3_p = params["w1"], params["w2"], params["w3"]
    b1_p, b2_p, b3_p = params["b1"], params["b2"], params["b3"]
    H1_p, H2_p, D_out_p = w1_p.shape[1], w2_p.shape[1], w3_p.shape[1]

    # ---- batch tiling -------------------------------------------------------
    B16 = _round_up(max(B, SUB), SUB)
    tb_req = max(SUB, _round_up(tb, SUB))
    if B16 > tb_req:
        tb_eff = tb_req                              # many steps, pipelined
    elif B16 >= 2 * LANE:
        # One tile would cover the whole batch; split into two >=128-row tiles
        # so v7x's two TensorCores both get work (no-op cost on v5e/v6e).
        tb_eff = _round_up((B16 + 1) // 2, SUB)
    else:
        tb_eff = B16                                 # toy case: single step
    B_p = _round_up(B16, tb_eff)
    grid = (B_p // tb_eff,)

    # Only per-call data movement: pad the batch rows of x (f32, no feature pad).
    x_p = jnp.pad(x, ((0, B_p - B), (0, 0)))

    grid_spec = pltpu.PrefetchScalarGridSpec(
        num_scalar_prefetch=0,
        grid=grid,
        in_specs=[
            pl.BlockSpec((tb_eff, D_in), lambda i: (i, 0)),    # x (batch-tiled, f32)
            pl.BlockSpec((D_in, H1_p), lambda i: (0, 0)),      # W1 (resident)
            pl.BlockSpec((1, H1_p), lambda i: (0, 0)),         # b1
            pl.BlockSpec((H1_p, H2_p), lambda i: (0, 0)),      # W2
            pl.BlockSpec((1, H2_p), lambda i: (0, 0)),         # b2
            pl.BlockSpec((H2_p, D_out_p), lambda i: (0, 0)),   # W3
            pl.BlockSpec((1, D_out_p), lambda i: (0, 0)),      # b3
        ],
        out_specs=pl.BlockSpec((tb_eff, D_out_p), lambda i: (i, 0)),
    )

    # Cost hint for XLA scheduling around the custom call.
    flops = 2 * B_p * (D_in * H1_p + H1_p * H2_p + H2_p * D_out_p)
    bytes_accessed = (
        x_p.size * 4                                            # f32 x read
        + (w1_p.size + w2_p.size + w3_p.size) * 2               # bf16 weights
        + (b1_p.size + b2_p.size + b3_p.size) * 4               # f32 biases
        + B_p * D_out_p * 2)                                    # bf16 out write

    # Explicit scoped-VMEM limit (v5e default is 16 MiB; cap at 64 MiB for v7x).
    vmem_est = (
        2 * tb_eff * (D_in * 4 + D_out_p * 2)                   # x/out, 2 buffers
        + 2 * 2 * (w1_p.size + w2_p.size + w3_p.size)           # bf16 weights
        + 2 * 4 * (b1_p.size + b2_p.size + b3_p.size)           # f32 biases
        + 4 * tb_eff * (H1_p + H2_p + D_out_p))                 # f32 intermediates
    vmem_limit = int(min(64 * 1024 * 1024,
                         max(32 * 1024 * 1024, 2 * vmem_est)))

    y_p = pl.pallas_call(
        mlp_kernel,
        out_shape=jax.ShapeDtypeStruct((B_p, D_out_p), bf16),
        grid_spec=grid_spec,
        compiler_params=pltpu.CompilerParams(
            dimension_semantics=("parallel",),
            vmem_limit_bytes=vmem_limit),
        cost_estimate=pl.CostEstimate(
            flops=flops, transcendentals=0, bytes_accessed=bytes_accessed),
    )(x_p, w1_p, b1_p, w2_p, b2_p, w3_p, b3_p)

    # Slice off batch/output padding; upcast bf16 -> f32 to match the module's
    # f32 output interface.
    return y_p[:B, :D_out].astype(f32)


def init_linear(key, fan_in, fan_out):
    """PyTorch nn.Linear default init: U(-1/sqrt(fan_in), 1/sqrt(fan_in)).
    Returned weight is already transposed to (fan_in, fan_out)."""
    kw, kb = jax.random.split(key)
    bound = 1.0 / jnp.sqrt(jnp.float32(fan_in))
    w = jax.random.uniform(kw, (fan_in, fan_out), jnp.float32, -bound, bound)
    b = jax.random.uniform(kb, (1, fan_out), jnp.float32, -bound, bound)
    return w, b


if __name__ == "__main__":
    # Shapes consistent with the module: D_in = x.shape[1], H1 = H2 = 50, D_out = 1.
    B, D_in, H1, H2, D_out = 16, 32, 50, 50, 1

    key = jax.random.PRNGKey(0)
    kx, k1, k2, k3 = jax.random.split(key, 4)

    x = jax.random.normal(kx, (B, D_in), jnp.float32)
    w1, b1 = init_linear(k1, D_in, H1)
    w2, b2 = init_linear(k2, H1, H2)
    w3, b3 = init_linear(k3, H2, D_out)

    # One-time param prep (padding + bf16 cast hoisted out of the forward call).
    params = prepare_params(w1, b1, w2, b2, w3, b3)

    # Force the Pallas path even at this toy batch size to exercise the kernel
    # (auto-dispatch would pick the plain XLA path for B < min_pallas_batch).
    y = three_layer_net(x, params, use_pallas=True)
    y = jax.block_until_ready(y)
    assert y.shape == (B, D_out)

    # Reference 1: pure-JAX with the same bf16-input / f32-accum / bf16-output
    # recipe (tight tolerance).
    xb = x.astype(jnp.bfloat16)
    w1b, w2b, w3b = (w.astype(jnp.bfloat16) for w in (w1, w2, w3))
    h1m = jnp.maximum(jnp.dot(xb, w1b, preferred_element_type=jnp.float32) + b1, 0.0)
    h2m = jnp.maximum(
        jnp.dot(h1m.astype(jnp.bfloat16), w2b, preferred_element_type=jnp.float32) + b2, 0.0)
    y_bf = jnp.dot(h2m.astype(jnp.bfloat16), w3b, preferred_element_type=jnp.float32) + b3
    y_bf = y_bf.astype(jnp.bfloat16).astype(jnp.float32)
    assert jnp.allclose(y, y_bf, atol=1e-2, rtol=1e-2), \
        float(jnp.max(jnp.abs(y - y_bf)))

    # Reference 2: full-f32 semantics of the torch module (loose tol for bf16 path).
    h1 = jnp.maximum(x @ w1 + b1, 0.0)
    h2 = jnp.maximum(h1 @ w2 + b2, 0.0)
    y_f32 = h2 @ w3 + b3
    assert jnp.allclose(y, y_f32, atol=5e-2, rtol=5e-2), \
        float(jnp.max(jnp.abs(y - y_f32)))

    # Also sanity-check the auto-dispatch (tiny batch -> plain XLA f32 path).
    y_auto = jax.block_until_ready(three_layer_net(x, params))
    assert jnp.allclose(y_auto, y_f32, atol=1e-5, rtol=1e-5)

    print("KERNEL_OK")
</pallas_src>

<mosaic_0001>
module attributes {stable_mosaic.version = 11 : i64} {
  func.func @mlp_kernel(%arg0: i32, %arg1: memref<16x32xf32, #tpu.memory_space<vmem>>, %arg2: memref<32x128xbf16, #tpu.memory_space<vmem>>, %arg3: memref<1x128xf32, #tpu.memory_space<vmem>>, %arg4: memref<128x128xbf16, #tpu.memory_space<vmem>>, %arg5: memref<1x128xf32, #tpu.memory_space<vmem>>, %arg6: memref<128x128xbf16, #tpu.memory_space<vmem>>, %arg7: memref<1x128xf32, #tpu.memory_space<vmem>>, %arg8: memref<16x128xbf16, #tpu.memory_space<vmem>>) attributes {dimension_semantics = [#tpu.dimension_semantics<parallel>], iteration_bounds = array<i64: 1>, scalar_prefetch = 0 : i64, scratch_operands = 0 : i64, tpu.core_type = #tpu.core_type<tc>, window_params = [{transform_indices = @transform_0, window_bounds = array<i64: 16, 32>}, {pipeline_mode = #tpu.pipeline_mode<synchronous>, transform_indices = @transform_1, window_bounds = array<i64: 32, 128>}, {pipeline_mode = #tpu.pipeline_mode<synchronous>, transform_indices = @transform_2, window_bounds = array<i64: 1, 128>}, {pipeline_mode = #tpu.pipeline_mode<synchronous>, transform_indices = @transform_3, window_bounds = array<i64: 128, 128>}, {pipeline_mode = #tpu.pipeline_mode<synchronous>, transform_indices = @transform_4, window_bounds = array<i64: 1, 128>}, {pipeline_mode = #tpu.pipeline_mode<synchronous>, transform_indices = @transform_5, window_bounds = array<i64: 128, 128>}, {pipeline_mode = #tpu.pipeline_mode<synchronous>, transform_indices = @transform_6, window_bounds = array<i64: 1, 128>}, {transform_indices = @transform_7, window_bounds = array<i64: 16, 128>}]} {
    %c0 = arith.constant 0 : index
    %c0_0 = arith.constant 0 : index
    %0 = vector.load %arg1[%c0, %c0_0] : memref<16x32xf32, #tpu.memory_space<vmem>>, vector<16x32xf32>
    %1 = arith.truncf %0 : vector<16x32xf32> to vector<16x32xbf16>
    %c0_1 = arith.constant 0 : index
    %c0_2 = arith.constant 0 : index
    %2 = vector.load %arg2[%c0_1, %c0_2] : memref<32x128xbf16, #tpu.memory_space<vmem>>, vector<32x128xbf16>
    %cst = arith.constant dense<0.000000e+00> : vector<16x128xf32>
    %3 = tpu.matmul %1, %2, %cst {dimension_numbers = #tpu.dot_dimension_numbers<[1], [0], [0], [1], [0, 0, 1, 1], [], []>} : vector<16x32xbf16>, vector<32x128xbf16>, vector<16x128xf32> -> vector<16x128xf32>
    %c0_3 = arith.constant 0 : index
    %c0_4 = arith.constant 0 : index
    %4 = vector.load %arg3[%c0_3, %c0_4] : memref<1x128xf32, #tpu.memory_space<vmem>>, vector<1x128xf32>
    %5 = vector.broadcast %4 : vector<1x128xf32> to vector<16x128xf32>
    %6 = arith.addf %3, %5 : vector<16x128xf32>
    %cst_5 = arith.constant 0.000000e+00 : f32
    %7 = vector.broadcast %cst_5 : f32 to vector<16x128xf32>
    %8 = arith.maximumf %6, %7 : vector<16x128xf32>
    %9 = arith.truncf %8 : vector<16x128xf32> to vector<16x128xbf16>
    %c0_6 = arith.constant 0 : index
    %c0_7 = arith.constant 0 : index
    %10 = vector.load %arg4[%c0_6, %c0_7] : memref<128x128xbf16, #tpu.memory_space<vmem>>, vector<128x128xbf16>
    %cst_8 = arith.constant dense<0.000000e+00> : vector<16x128xf32>
    %11 = tpu.matmul %9, %10, %cst_8 {dimension_numbers = #tpu.dot_dimension_numbers<[1], [0], [0], [1], [0, 0, 1, 1], [], []>} : vector<16x128xbf16>, vector<128x128xbf16>, vector<16x128xf32> -> vector<16x128xf32>
    %c0_9 = arith.constant 0 : index
    %c0_10 = arith.constant 0 : index
    %12 = vector.load %arg5[%c0_9, %c0_10] : memref<1x128xf32, #tpu.memory_space<vmem>>, vector<1x128xf32>
    %13 = vector.broadcast %12 : vector<1x128xf32> to vector<16x128xf32>
    %14 = arith.addf %11, %13 : vector<16x128xf32>
    %cst_11 = arith.constant 0.000000e+00 : f32
    %15 = vector.broadcast %cst_11 : f32 to vector<16x128xf32>
    %16 = arith.maximumf %14, %15 : vector<16x128xf32>
    %17 = arith.truncf %16 : vector<16x128xf32> to vector<16x128xbf16>
    %c0_12 = arith.constant 0 : index
    %c0_13 = arith.constant 0 : index
    %18 = vector.load %arg6[%c0_12, %c0_13] : memref<128x128xbf16, #tpu.memory_space<vmem>>, vector<128x128xbf16>
    %cst_14 = arith.constant dense<0.000000e+00> : vector<16x128xf32>
    %19 = tpu.matmul %17, %18, %cst_14 {dimension_numbers = #tpu.dot_dimension_numbers<[1], [0], [0], [1], [0, 0, 1, 1], [], []>} : vector<16x128xbf16>, vector<128x128xbf16>, vector<16x128xf32> -> vector<16x128xf32>
    %c0_15 = arith.constant 0 : index
    %c0_16 = arith.constant 0 : index
    %20 = vector.load %arg7[%c0_15, %c0_16] : memref<1x128xf32, #tpu.memory_space<vmem>>, vector<1x128xf32>
    %21 = vector.broadcast %20 : vector<1x128xf32> to vector<16x128xf32>
    %22 = arith.addf %19, %21 : vector<16x128xf32>
    %23 = arith.truncf %22 : vector<16x128xf32> to vector<16x128xbf16>
    %c0_17 = arith.constant 0 : index
    %c0_18 = arith.constant 0 : index
    %24 = vector.load %arg8[%c0_17, %c0_18] : memref<16x128xbf16, #tpu.memory_space<vmem>>, vector<16x128xbf16>
    tpu.vector_store %arg8[%c0_17, %c0_18], %23 {strides = array<i32>} : memref<16x128xbf16, #tpu.memory_space<vmem>>, vector<16x128xbf16>,
    return
  }
  func.func @transform_0(%arg0: i32) -> (i32, i32) {
    %c0_i32 = arith.constant 0 : i32
    %c0_i32_0 = arith.constant 0 : i32
    return %arg0, %c0_i32 : i32, i32
  }
  func.func @transform_1(%arg0: i32) -> (i32, i32) {
    %c0_i32 = arith.constant 0 : i32
    %c0_i32_0 = arith.constant 0 : i32
    %c0_i32_1 = arith.constant 0 : i32
    return %c0_i32, %c0_i32_0 : i32, i32
  }
  func.func @transform_2(%arg0: i32) -> (i32, i32) {
    %c0_i32 = arith.constant 0 : i32
    %c0_i32_0 = arith.constant 0 : i32
    %c0_i32_1 = arith.constant 0 : i32
    return %c0_i32, %c0_i32_0 : i32, i32
  }
  func.func @transform_3(%arg0: i32) -> (i32, i32) {
    %c0_i32 = arith.constant 0 : i32
    %c0_i32_0 = arith.constant 0 : i32
    %c0_i32_1 = arith.constant 0 : i32
    return %c0_i32, %c0_i32_0 : i32, i32
  }
  func.func @transform_4(%arg0: i32) -> (i32, i32) {
    %c0_i32 = arith.constant 0 : i32
    %c0_i32_0 = arith.constant 0 : i32
    %c0_i32_1 = arith.constant 0 : i32
    return %c0_i32, %c0_i32_0 : i32, i32
  }
  func.func @transform_5(%arg0: i32) -> (i32, i32) {
    %c0_i32 = arith.constant 0 : i32
    %c0_i32_0 = arith.constant 0 : i32
    %c0_i32_1 = arith.constant 0 : i32
    return %c0_i32, %c0_i32_0 : i32, i32
  }
  func.func @transform_6(%arg0: i32) -> (i32, i32) {
    %c0_i32 = arith.constant 0 : i32
    %c0_i32_0 = arith.constant 0 : i32
    %c0_i32_1 = arith.constant 0 : i32
    return %c0_i32, %c0_i32_0 : i32, i32
  }
  func.func @transform_7(%arg0: i32) -> (i32, i32) {
    %c0_i32 = arith.constant 0 : i32
    %c0_i32_0 = arith.constant 0 : i32
    return %arg0, %c0_i32 : i32, i32
  }
}

</mosaic_0001>

<llo_original>
// kernel: tpu_custom_call.1
$region0: #{tpu_custom_call.1}
  #allocation0 [shape = 'u32[]', space=smem, size = 0x4, offset = 0x4, fixed_abs, tag = 'smem constant byte address 0x4 - core index']
  #allocation1 [shape = 'u32[72,128]{1,0:T(1,128)}', space=vmem, size = 0x9000, scoped, tag = 'internal scratch']
  %s0 = inlined_call_operand.hbm [shape: f32[16,32], index: 0, kind: input, shape index: {}]
  %s1 = inlined_call_operand.hbm [shape: bf16[32,128], index: 1, kind: input, shape index: {}]
  %s2 = inlined_call_operand.vmem [shape: f32[1,128], index: 2, kind: input, shape index: {}]
  %s3 = inlined_call_operand.hbm [shape: bf16[128,128], index: 3, kind: input, shape index: {}]
  %s4 = inlined_call_operand.vmem [shape: f32[1,128], index: 4, kind: input, shape index: {}]
  %s5 = inlined_call_operand.hbm [shape: bf16[128,128], index: 5, kind: input, shape index: {}]
  %s6 = inlined_call_operand.vmem [shape: f32[1,128], index: 6, kind: input, shape index: {}]
  %s7 = inlined_call_operand.hbm [shape: bf16[16,128], index: 7, kind: output, shape index: {}]
  %s8 = sld [smem:[#allocation0]]
  $region54: #{tpu_custom_call.1} parent=0
    _
  %s10 = ssub.s32 1, %s8
  %s11 = scalar_select 0, %s10, %s8
  $region1: #{tpu_custom_call.1} parent=0
    #allocation2 [shape = 'u8[8192]{0}', space=vmem, size = 0x2000, scoped, tag = 'input window, operand 0, single buffered']
    #allocation3 [shape = 's32[1]{0}', space=sflag, size = 0x4, scoped, tag = 'scoped memory for tpu_custom_call.1']
    #allocation4 [shape = 's32[1]{0}', space=sflag, size = 0x4, scoped, tag = 'scoped memory for tpu_custom_call.1']
    #allocation5 [shape = 'u8[8192]{0}', space=vmem, size = 0x2000, scoped, tag = 'input window, operand 1, single buffered']
    #allocation6 [shape = 's32[1]{0}', space=sflag, size = 0x4, scoped, tag = 'scoped memory for tpu_custom_call.1']
    #allocation7 [shape = 'u8[32768]{0}', space=vmem, size = 0x8000, scoped, tag = 'input window, operand 3, single buffered']
    #allocation8 [shape = 'u8[32768]{0}', space=vmem, size = 0x8000, scoped, tag = 'input window, operand 5, single buffered']
    #allocation9 [shape = 's32[1]{0}', space=sflag, size = 0x4, scoped, tag = 'scoped memory for tpu_custom_call.1']
    #allocation10 [shape = 'u8[4096]{0}', space=vmem, size = 0x1000, scoped, tag = 'output window, operand 0, single buffered']
    %12 = vsyncpa [#allocation3], 0
    %13 = vsyncpa [#allocation6], 0
    %14 = vsyncpa [#allocation9], 0
    %15 = vsyncpa [#allocation4], 0
    // Predicated region
    $region2: #{tpu_custom_call.1} parent=1 // pred_check
      _
    $region3: #{tpu_custom_call.1} parent=1 // pred_check_branch
      %17 = sbr.rel (0) target = $region5
    $region4: #{tpu_custom_call.1} parent=1 // pred_region
      %19 = vsyncadd [#allocation3], 0
      %s20 = sshll.u32 %s0, 4
      %s21 = int_to_ptr.hbm [resolvable:$true] %s20
      %s22 = sshll.u32 [#allocation2], 4
      %s23 = int_to_ptr.vmem [resolvable:$true] %s22
      %28 = dma.hbm_to_vmem [thread:$0]  %s21, 256, %s23, [#allocation3], 128, 128, 8
    $region5: #{tpu_custom_call.1} parent=1 // pred_fallthru
      _
    // Predicated region
    $region6: #{tpu_custom_call.1} parent=1 // pred_check
      _
    $region7: #{tpu_custom_call.1} parent=1 // pred_check_branch
      %30 = sbr.rel (0) target = $region9
    $region8: #{tpu_custom_call.1} parent=1 // pred_region
      %32 = vsyncadd [#allocation6], 0
      %s33 = sshll.u32 %s1, 4
      %s34 = int_to_ptr.hbm [resolvable:$true] %s33
      %s35 = sshll.u32 [#allocation5], 4
      %s36 = int_to_ptr.vmem [resolvable:$true] %s35
      %41 = dma.hbm_to_vmem [thread:$0]  %s34, 256, %s36, [#allocation6], 64, 64, 4
    $region9: #{tpu_custom_call.1} parent=1 // pred_fallthru
      _
    // Predicated region
    $region10: #{tpu_custom_call.1} parent=1 // pred_check
      _
    $region11: #{tpu_custom_call.1} parent=1 // pred_check_branch
      %43 = sbr.rel (0) target = $region13
    $region12: #{tpu_custom_call.1} parent=1 // pred_region
      _
    $region13: #{tpu_custom_call.1} parent=1 // pred_fallthru
      _
    // Predicated region
    $region14: #{tpu_custom_call.1} parent=1 // pred_check
      _
    $region15: #{tpu_custom_call.1} parent=1 // pred_check_branch
      %45 = sbr.rel (0) target = $region17
    $region16: #{tpu_custom_call.1} parent=1 // pred_region
      %47 = vsyncadd [#allocation6], 0
      %s48 = sshll.u32 %s3, 4
      %s49 = int_to_ptr.hbm [resolvable:$true] %s48
      %s50 = sshll.u32 [#allocation7], 4
      %s51 = int_to_ptr.vmem [resolvable:$true] %s50
      %56 = dma.hbm_to_vmem [thread:$0]  %s49, 1024, %s51, [#allocation6], 64, 64, 4
    $region17: #{tpu_custom_call.1} parent=1 // pred_fallthru
      _
    // Predicated region
    $region18: #{tpu_custom_call.1} parent=1 // pred_check
      _
    $region19: #{tpu_custom_call.1} parent=1 // pred_check_branch
      %58 = sbr.rel (0) target = $region21
    $region20: #{tpu_custom_call.1} parent=1 // pred_region
      _
    $region21: #{tpu_custom_call.1} parent=1 // pred_fallthru
      _
    // Predicated region
    $region22: #{tpu_custom_call.1} parent=1 // pred_check
      _
    $region23: #{tpu_custom_call.1} parent=1 // pred_check_branch
      %60 = sbr.rel (0) target = $region25
    $region24: #{tpu_custom_call.1} parent=1 // pred_region
      %62 = vsyncadd [#allocation9], 0
      %s63 = sshll.u32 %s5, 4
      %s64 = int_to_ptr.hbm [resolvable:$true] %s63
      %s65 = sshll.u32 [#allocation8], 4
      %s66 = int_to_ptr.vmem [resolvable:$true] %s65
      %71 = dma.hbm_to_vmem [thread:$0]  %s64, 1024, %s66, [#allocation9], 64, 64, 4
    $region25: #{tpu_custom_call.1} parent=1 // pred_fallthru
      _
    // Predicated region
    $region26: #{tpu_custom_call.1} parent=1 // pred_check
      _
    $region27: #{tpu_custom_call.1} parent=1 // pred_check_branch
      %73 = sbr.rel (0) target = $region29
    $region28: #{tpu_custom_call.1} parent=1 // pred_region
      _
    $region29: #{tpu_custom_call.1} parent=1 // pred_fallthru
      _
    // Predicated region
    $region30: #{tpu_custom_call.1} parent=1 // pred_check
      _
    $region31: #{tpu_custom_call.1} parent=1 // pred_check_branch
      %75 = sbr.rel (0) target = $region33
    $region32: #{tpu_custom_call.1} parent=1 // pred_region
      %77 = dma.done [#allocation3], 256
    $region33: #{tpu_custom_call.1} parent=1 // pred_fallthru
      _
    // Predicated region
    $region34: #{tpu_custom_call.1} parent=1 // pred_check
      _
    $region35: #{tpu_custom_call.1} parent=1 // pred_check_branch
      %79 = sbr.rel (0) target = $region37
    $region36: #{tpu_custom_call.1} parent=1 // pred_region
      %81 = dma.done [#allocation6], 256
    $region37: #{tpu_custom_call.1} parent=1 // pred_fallthru
      _
    // Predicated region
    $region38: #{tpu_custom_call.1} parent=1 // pred_check
      _
    $region39: #{tpu_custom_call.1} parent=1 // pred_check_branch
      %83 = sbr.rel (0) target = $region41
    $region40: #{tpu_custom_call.1} parent=1 // pred_region
      %85 = dma.done [#allocation6], 1024
    $region41: #{tpu_custom_call.1} parent=1 // pred_fallthru
      _
    // Predicated region
    $region42: #{tpu_custom_call.1} parent=1 // pred_check
      _
    $region43: #{tpu_custom_call.1} parent=1 // pred_check_branch
      %87 = sbr.rel (0) target = $region45
    $region44: #{tpu_custom_call.1} parent=1 // pred_region
      %89 = dma.done [#allocation9], 1024
    $region45: #{tpu_custom_call.1} parent=1 // pred_fallthru
      _
    %v91 = vld [vmem:[#allocation2] sm:$0xff]
    %v92 = vld [vmem:[#allocation2 + $0x8] sm:$0xff]
    %v93 = vpack.c.bf16 %v92, %v91
    %v94 = vld [vmem:[#allocation5] sm:$0xf]
    %v95 = vld [vmem:[#allocation5 + $0x4] sm:$0xf]
    %v96 = vld [vmem:[#allocation5 + $0x8] sm:$0xf]
    %v97 = vld [vmem:[#allocation5 + $0xc] sm:$0xf]
    %v98 = vld [vmem:[%s2] sm:$0x1]
    %v100 = vperm.slane %v98, 0
    %v106 = vunpack.c.l.b16 %v94
    %v107 = vunpack.c.l.b16 %v95
    %v108 = vunpack.c.l.b16 %v96
    %v109 = vunpack.c.l.b16 %v97
    %v110 = vpack.c.b16 %v107, %v106
    %v111 = vpack.c.b16 %v109, %v108
    %vm114 = vcmask 261120
    %v116 = vsel %vm114, %v93, 0
    %118 = vmatpush.bf16.msra.mxu0 0
    %119 = vmatpush.bf16.msra.mxu0 0
    %120 = vmatpush.bf16.msra.mxu0 0
    %121 = vmatpush.bf16.msra.mxu0 0
    %122 = vmatpush.bf16.msra.mxu0 0
    %123 = vmatpush.bf16.msra.mxu0 0
    %124 = vmatpush.bf16.msra.mxu0 %v111
    %125 = vmatpush.bf16.msra.mxu0 %v110
    %126 = vmatmul.bf16.gmra.mxu0 %v116
    %v127 = vpop.f32.mrf.mxu0
    %v128 = vadd.f32 %v100, %v127
    %v129 = vpop.f32.mrf.mxu0
    %v130 = vadd.f32 %v100, %v129
    %131 = vdwg.mxu0
    %v132 = vmax.f32 %v128, 0.0
    %v133 = vmax.f32 %v130, 0.0
    %v134 = vpack.c.bf16 %v133, %v132
    %v135 = vld [vmem:[#allocation7] sm:$0xf]
    %v136 = vld [vmem:[#allocation7 + $0x4] sm:$0xf]
    %v137 = vld [vmem:[#allocation7 + $0x8] sm:$0xf]
    %v138 = vld [vmem:[#allocation7 + $0xc] sm:$0xf]
    %v139 = vld [vmem:[#allocation7 + $0x10] sm:$0xf]
    %v140 = vld [vmem:[#allocation7 + $0x14] sm:$0xf]
    %v141 = vld [vmem:[#allocation7 + $0x18] sm:$0xf]
    %v142 = vld [vmem:[#allocation7 + $0x1c] sm:$0xf]
    %v143 = vld [vmem:[#allocation7 + $0x20] sm:$0xf]
    %v144 = vld [vmem:[#allocation7 + $0x24] sm:$0xf]
    %v145 = vld [vmem:[#allocation7 + $0x28] sm:$0xf]
    %v146 = vld [vmem:[#allocation7 + $0x2c] sm:$0xf]
    %v147 = vld [vmem:[#allocation7 + $0x30] sm:$0xf]
    %v148 = vld [vmem:[#allocation7 + $0x34] sm:$0xf]
    %v149 = vld [vmem:[#allocation7 + $0x38] sm:$0xf]
    %v150 = vld [vmem:[#allocation7 + $0x3c] sm:$0xf]
    %v151 = vld [vmem:[%s4] sm:$0x1]
    %v153 = vperm.slane %v151, 0
    %v171 = vunpack.c.l.b16 %v135
    %v172 = vunpack.c.l.b16 %v136
    %v173 = vunpack.c.l.b16 %v137
    %v174 = vunpack.c.l.b16 %v138
    %v175 = vunpack.c.l.b16 %v139
    %v176 = vunpack.c.l.b16 %v140
    %v177 = vunpack.c.l.b16 %v141
    %v178 = vunpack.c.l.b16 %v142
    %v179 = vunpack.c.l.b16 %v143
    %v180 = vunpack.c.l.b16 %v144
    %v181 = vunpack.c.l.b16 %v145
    %v182 = vunpack.c.l.b16 %v146
    %v183 = vunpack.c.l.b16 %v147
    %v184 = vunpack.c.l.b16 %v148
    %v185 = vunpack.c.l.b16 %v149
    %v186 = vunpack.c.l.b16 %v150
    %v187 = vpack.c.b16 %v172, %v171
    %v188 = vpack.c.b16 %v174, %v173
    %v189 = vpack.c.b16 %v176, %v175
    %v190 = vpack.c.b16 %v178, %v177
    %v191 = vpack.c.b16 %v180, %v179
    %v192 = vpack.c.b16 %v182, %v181
    %v193 = vpack.c.b16 %v184, %v183
    %v194 = vpack.c.b16 %v186, %v185
    %203 = vmatpush.bf16.msra.mxu0 %v194
    %204 = vmatpush.bf16.msra.mxu0 %v193
    %205 = vmatpush.bf16.msra.mxu0 %v192
    %206 = vmatpush.bf16.msra.mxu0 %v191
    %207 = vmatpush.bf16.msra.mxu0 %v190
    %208 = vmatpush.bf16.msra.mxu0 %v189
    %209 = vmatpush.bf16.msra.mxu0 %v188
    %210 = vmatpush.bf16.msra.mxu0 %v187
    %211 = vmatmul.bf16.gmra.mxu0 %v134
    %v212 = vpop.f32.mrf.mxu0
    %v213 = vadd.f32 %v153, %v212
    %v214 = vpop.f32.mrf.mxu0
    %v215 = vadd.f32 %v153, %v214
    %216 = vdwg.mxu0
    %v217 = vmax.f32 %v213, 0.0
    %v218 = vmax.f32 %v215, 0.0
    %v219 = vpack.c.bf16 %v218, %v217
    %v220 = vld [vmem:[#allocation8] sm:$0xf]
    %v221 = vld [vmem:[#allocation8 + $0x4] sm:$0xf]
    %v222 = vld [vmem:[#allocation8 + $0x8] sm:$0xf]
    %v223 = vld [vmem:[#allocation8 + $0xc] sm:$0xf]
    %v224 = vld [vmem:[#allocation8 + $0x10] sm:$0xf]
    %v225 = vld [vmem:[#allocation8 + $0x14] sm:$0xf]
    %v226 = vld [vmem:[#allocation8 + $0x18] sm:$0xf]
    %v227 = vld [vmem:[#allocation8 + $0x1c] sm:$0xf]
    %v228 = vld [vmem:[#allocation8 + $0x20] sm:$0xf]
    %v229 = vld [vmem:[#allocation8 + $0x24] sm:$0xf]
    %v230 = vld [vmem:[#allocation8 + $0x28] sm:$0xf]
    %v231 = vld [vmem:[#allocation8 + $0x2c] sm:$0xf]
    %v232 = vld [vmem:[#allocation8 + $0x30] sm:$0xf]
    %v233 = vld [vmem:[#allocation8 + $0x34] sm:$0xf]
    %v234 = vld [vmem:[#allocation8 + $0x38] sm:$0xf]
    %v235 = vld [vmem:[#allocation8 + $0x3c] sm:$0xf]
    %v236 = vld [vmem:[%s6] sm:$0x1]
    %v238 = vperm.slane %v236, 0
    %v256 = vunpack.c.l.b16 %v220
    %v257 = vunpack.c.l.b16 %v221
    %v258 = vunpack.c.l.b16 %v222
    %v259 = vunpack.c.l.b16 %v223
    %v260 = vunpack.c.l.b16 %v224
    %v261 = vunpack.c.l.b16 %v225
    %v262 = vunpack.c.l.b16 %v226
    %v263 = vunpack.c.l.b16 %v227
    %v264 = vunpack.c.l.b16 %v228
    %v265 = vunpack.c.l.b16 %v229
    %v266 = vunpack.c.l.b16 %v230
    %v267 = vunpack.c.l.b16 %v231
    %v268 = vunpack.c.l.b16 %v232
    %v269 = vunpack.c.l.b16 %v233
    %v270 = vunpack.c.l.b16 %v234
    %v271 = vunpack.c.l.b16 %v235
    %v272 = vpack.c.b16 %v257, %v256
    %v273 = vpack.c.b16 %v259, %v258
    %v274 = vpack.c.b16 %v261, %v260
    %v275 = vpack.c.b16 %v263, %v262
    %v276 = vpack.c.b16 %v265, %v264
    %v277 = vpack.c.b16 %v267, %v266
    %v278 = vpack.c.b16 %v269, %v268
    %v279 = vpack.c.b16 %v271, %v270
    %288 = vmatpush.bf16.msra.mxu0 %v279
    %289 = vmatpush.bf16.msra.mxu0 %v278
    %290 = vmatpush.bf16.msra.mxu0 %v277
    %291 = vmatpush.bf16.msra.mxu0 %v276
    %292 = vmatpush.bf16.msra.mxu0 %v275
    %293 = vmatpush.bf16.msra.mxu0 %v274
    %294 = vmatpush.bf16.msra.mxu0 %v273
    %295 = vmatpush.bf16.msra.mxu0 %v272
    %296 = vmatmul.bf16.gmra.mxu0 %v219
    %v297 = vpop.f32.mrf.mxu0
    %v298 = vadd.f32 %v238, %v297
    %v299 = vpop.f32.mrf.mxu0
    %v300 = vadd.f32 %v238, %v299
    %301 = vdwg.mxu0
    %v302 = vpack.c.bf16 %v298, %v298
    %v303 = vpack.c.bf16 %v300, %v300
    %304 = vst [vmem:[#allocation10] sm:$0xf] %v302
    %305 = vst [vmem:[#allocation10 + $0x4] sm:$0xf] %v303
    // Predicated region
    $region46: #{tpu_custom_call.1} parent=1 // pred_check
      _
    $region47: #{tpu_custom_call.1} parent=1 // pred_check_branch
      %307 = sbr.rel (0) target = $region49
    $region48: #{tpu_custom_call.1} parent=1 // pred_region
      %309 = vsyncadd [#allocation4], 0
      %s310 = sshll.u32 [#allocation10], 4
      %s311 = int_to_ptr.vmem [resolvable:$true] %s310
      %s312 = sshll.u32 %s7, 4
      %s313 = int_to_ptr.hbm [resolvable:$true] %s312
      %318 = dma.vmem_to_hbm [thread:$0]  %s311, 128, %s313, [#allocation4], 64, 64, 4
    $region49: #{tpu_custom_call.1} parent=1 // pred_fallthru
      _
    // Predicated region
    $region50: #{tpu_custom_call.1} parent=1 // pred_check
      _
    $region51: #{tpu_custom_call.1} parent=1 // pred_check_branch
      %320 = sbr.rel (0) target = $region53
    $region52: #{tpu_custom_call.1} parent=1 // pred_region
      %322 = dma.done [#allocation4], 128
    $region53: #{tpu_custom_call.1} parent=1 // pred_fallthru
      _
    %323 = vsyncpa [#allocation3], 1
    %324 = vsyncpa [#allocation6], 1
    %325 = vsyncpa [#allocation9], 1
    %326 = vsyncpa [#allocation4], 1

</llo_original>
